<compile_context>
chip_gen: v6e
topology: v6e:2x2x1
jax: 0.10.0
libtpu: 0.0.40
codegen_flags: <defaults>
</compile_context>

<pallas_src>
import functools
import math

import jax
import jax.numpy as jnp
from jax.experimental import pallas as pl
from jax.experimental.pallas import tpu as pltpu


def _round_up(x, m):
    return ((x + m - 1) // m) * m


def _vmem_budget():
    """Generation-aware VMEM limit + tile planning budget."""
    try:
        info = pltpu.get_tpu_info()
        cap = int(getattr(info, "vmem_capacity_bytes", 0)) or 64 * 1024 * 1024
    except Exception:
        cap = 64 * 1024 * 1024          # conservative fallback (v7x-sized)
    limit = int(cap * 0.70)             # what we let Mosaic use
    budget = int(limit * 0.60)          # what the tile planner accounts against
    return limit, budget


def _gat_row_bytes(Np, H, HD, num_etypes, has_ra, ret_a, has_res):
    """Per-destination-row VMEM bytes of the attention kernel."""
    b = 2 * Np * 1                      # packed graph int8 (double buffered)
    b += 2 * H * 4                      # er tile f32
    b += 2 * HD * 4                     # out tile f32
    if has_ra:
        b += 2 * H * Np * 2             # res_attn in (bf16)
    if ret_a:
        b += 2 * H * Np * 2             # attention out (bf16)
    if has_res:
        b += 2 * HD * 4                 # residual tile f32
    b += (num_etypes + 8) * Np * 4      # softmax / one-hot f32 intermediates
    return b


def _gat_fixed_bytes(Np, H, D):
    """Resident (grid-invariant) blocks: feat (bf16) + el (f32), counted x2."""
    return 2 * H * Np * D * 2 + 2 * H * Np * 4


def plan_tiles(N, layer_cfgs, num_etypes, budget):
    """Pick a VMEM-aware row tile (multiple of 32) and the padded node count."""
    np0 = _round_up(max(N, 32), 32)
    tm = 512
    for (H, D, has_ra, ret_a, has_res) in layer_cfgs:
        HD = H * D
        avail = budget - _gat_fixed_bytes(np0, H, D)
        row = _gat_row_bytes(np0, H, HD, num_etypes, has_ra, ret_a, has_res)
        if avail <= 32 * row:
            t = 32
        else:
            t = max(32, min(512, (avail // row) // 32 * 32))
        tm = min(tm, t)
    tm = min(tm, np0)
    Np = _round_up(N, tm)
    return tm, Np


# ---------------------------------------------------------------------------
# Projection kernels (row-tiled, lane-dense, bf16 MXU operands)
# ---------------------------------------------------------------------------

def _linear_bias_kernel(x_ref, w_ref, b_ref, o_ref):
    x = x_ref[...].astype(jnp.bfloat16)
    o_ref[...] = (jnp.dot(x, w_ref[...], preferred_element_type=jnp.float32)
                  + b_ref[...])


def linear_bias(x, w_bf16, b, *, tm, vmem_limit):
    Np, Fin = x.shape
    Fout = w_bf16.shape[1]
    return pl.pallas_call(
        _linear_bias_kernel,
        out_shape=jax.ShapeDtypeStruct((Np, Fout), jnp.float32),
        grid=(Np // tm,),
        in_specs=[pl.BlockSpec((tm, Fin), lambda r: (r, 0)),
                  pl.BlockSpec((Fin, Fout), lambda r: (0, 0)),
                  pl.BlockSpec((1, Fout), lambda r: (0, 0))],
        out_specs=pl.BlockSpec((tm, Fout), lambda r: (r, 0)),
        compiler_params=pltpu.CompilerParams(
            dimension_semantics=("parallel",), vmem_limit_bytes=vmem_limit),
    )(x, w_bf16, b)


def _fused_proj_kernel(x_ref, w_ref, *out_refs, H, D, HD, fuse_res):
    """One matmul produces feat (head-major bf16), el/er columns and residual."""
    feat_ref = out_refs[0]             # (H, tm, D)  bf16
    ler_ref = out_refs[1]              # (tm, 2H)    f32
    res_ref = out_refs[2] if fuse_res else None

    x = x_ref[...].astype(jnp.bfloat16)
    y = jnp.dot(x, w_ref[...], preferred_element_type=jnp.float32)
    for h in range(H):                 # head-major slab writes (no HBM transpose)
        feat_ref[h] = y[:, h * D:(h + 1) * D].astype(jnp.bfloat16)
    nler = 2 * H
    ler_ref[...] = y[:, HD:HD + nler]
    if fuse_res:
        res_ref[...] = y[:, HD + nler:]


def fused_projection(x, w_fused_bf16, *, H, D, fuse_res, tm, vmem_limit):
    Np, Fin = x.shape
    HD = H * D
    total = w_fused_bf16.shape[1]
    out_shapes = [jax.ShapeDtypeStruct((H, Np, D), jnp.bfloat16),
                  jax.ShapeDtypeStruct((Np, 2 * H), jnp.float32)]
    out_specs = [pl.BlockSpec((H, tm, D), lambda r: (0, r, 0)),
                 pl.BlockSpec((tm, 2 * H), lambda r: (r, 0))]
    if fuse_res:
        out_shapes.append(jax.ShapeDtypeStruct((Np, HD), jnp.float32))
        out_specs.append(pl.BlockSpec((tm, HD), lambda r: (r, 0)))

    kernel = functools.partial(_fused_proj_kernel, H=H, D=D, HD=HD,
                               fuse_res=fuse_res)
    outs = pl.pallas_call(
        kernel,
        out_shape=tuple(out_shapes),
        grid=(Np // tm,),
        in_specs=[pl.BlockSpec((tm, Fin), lambda r: (r, 0)),
                  pl.BlockSpec((Fin, total), lambda r: (0, 0))],
        out_specs=tuple(out_specs),
        compiler_params=pltpu.CompilerParams(
            dimension_semantics=("parallel",), vmem_limit_bytes=vmem_limit),
    )(x, w_fused_bf16)
    feat, ler = outs[0], outs[1]
    res = outs[2] if fuse_res else None
    return feat, ler, res


# ---------------------------------------------------------------------------
# Row-tiled myGATConv kernel (all heads per row tile)
# ---------------------------------------------------------------------------

def _gat_rowblock_kernel(*refs, H, D, num_etypes, alpha, negative_slope,
                         has_res_attn, has_residual, apply_elu, return_attn):
    it = iter(refs)
    feat_ref = next(it)        # (H, Np, D)      bf16, resident (all src nodes)
    el_ref = next(it)          # (H, Np)         f32,  resident
    er_ref = next(it)          # (TM, H)         f32,  dst row tile
    ee_ref = next(it)          # (H, num_etypes) f32 in SMEM
    g_ref = next(it)           # (TM, Np)        int8 packed graph (-1 = no edge)
    ra_ref = next(it) if has_res_attn else None    # (H, TM, Np) bf16
    res_ref = next(it) if has_residual else None   # (TM, H*D)   f32
    out_ref = next(it)                             # (TM, H*D)   f32
    a_ref = next(it) if return_attn else None      # (H, TM, Np) bf16

    g = g_ref[...].astype(jnp.int32)
    edge = g >= 0
    # edge-type one-hots hoisted out of the head loop (num_etypes compares total)
    onehots = [(g == t).astype(jnp.float32) for t in range(num_etypes)]
    er_all = er_ref[...]                            # (TM, H) - tiny, load once
    neg_inf = jnp.float32(-1e30)
    slope = jnp.float32(negative_slope)

    for h in range(H):                              # static loop over heads
        el_row = el_ref[h:h + 1, :]                 # (1, Np)
        er_col = er_all[:, h:h + 1]                 # (TM, 1)
        ee = onehots[0] * ee_ref[h, 0]
        for t in range(1, num_etypes):
            ee = ee + onehots[t] * ee_ref[h, t]     # FMAs over the (TM,Np) tile

        e = er_col + el_row + ee                    # (TM, Np)
        e = jnp.maximum(e, slope * e)               # leaky_relu (0 < slope < 1)
        # dst-wise edge softmax over src axis; self-loops guarantee >=1 edge/row
        e = jnp.where(edge, e, neg_inf)
        m = jnp.max(e, axis=-1, keepdims=True)
        p = jnp.exp(e - m)
        s = jnp.sum(p, axis=-1, keepdims=True)
        a = p * pl.reciprocal(jnp.maximum(s, jnp.float32(1e-12)), approx=True)

        if has_res_attn:                            # attention residual blend
            a = a * (1.0 - alpha) + alpha * ra_ref[h].astype(jnp.float32)
        if return_attn:
            a_ref[h] = a.astype(jnp.bfloat16)

        # aggregation: rst[v] = sum_u a[v,u] * feat[u]  (bf16 MXU, f32 accumulate)
        agg = jnp.dot(a.astype(jnp.bfloat16), feat_ref[h],
                      preferred_element_type=jnp.float32)      # (TM, D)
        if has_residual:
            agg = agg + res_ref[:, h * D:(h + 1) * D]
        if apply_elu:
            agg = jnp.where(agg > 0.0, agg,
                            jnp.exp(jnp.minimum(agg, 0.0)) - 1.0)
        out_ref[:, h * D:(h + 1) * D] = agg         # direct slab write, no concat


def gat_conv_layer(feat, el_t, er, ee_type, graph, res_attn=None, resval=None,
                   *, alpha, negative_slope, apply_elu, return_attn,
                   tm, vmem_limit):
    """One myGATConv layer. Returns (out (Np, H*D) f32, a (H,Np,Np) bf16 or None)."""
    H, Np, D = feat.shape
    HD = H * D
    num_etypes = ee_type.shape[1]
    has_ra = res_attn is not None
    has_res = resval is not None

    in_specs = [
        pl.BlockSpec((H, Np, D), lambda r: (0, 0, 0)),         # feat (resident)
        pl.BlockSpec((H, Np), lambda r: (0, 0)),               # el (resident)
        pl.BlockSpec((tm, H), lambda r: (r, 0)),               # er row tile
        pl.BlockSpec(memory_space=pltpu.MemorySpace.SMEM),     # ee table
        pl.BlockSpec((tm, Np), lambda r: (r, 0)),              # packed graph rows
    ]
    args = [feat, el_t, er, ee_type, graph]
    if has_ra:
        in_specs.append(pl.BlockSpec((H, tm, Np), lambda r: (0, r, 0)))
        args.append(res_attn)
    if has_res:
        in_specs.append(pl.BlockSpec((tm, HD), lambda r: (r, 0)))
        args.append(resval)

    out_shapes = [jax.ShapeDtypeStruct((Np, HD), jnp.float32)]
    out_specs = [pl.BlockSpec((tm, HD), lambda r: (r, 0))]
    if return_attn:
        out_shapes.append(jax.ShapeDtypeStruct((H, Np, Np), jnp.bfloat16))
        out_specs.append(pl.BlockSpec((H, tm, Np), lambda r: (0, r, 0)))

    kernel = functools.partial(
        _gat_rowblock_kernel,
        H=H, D=D, num_etypes=num_etypes,
        alpha=float(alpha), negative_slope=float(negative_slope),
        has_res_attn=has_ra, has_residual=has_res,
        apply_elu=apply_elu, return_attn=return_attn)

    outs = pl.pallas_call(
        kernel,
        out_shape=tuple(out_shapes),
        grid=(Np // tm,),
        in_specs=in_specs,
        out_specs=tuple(out_specs),
        compiler_params=pltpu.CompilerParams(
            dimension_semantics=("parallel",), vmem_limit_bytes=vmem_limit),
    )(*args)
    if return_attn:
        return outs[0], outs[1]
    return outs[0], None


# ---------------------------------------------------------------------------
# Parameter init (deterministic, synthetic)
# ---------------------------------------------------------------------------

def init_params(key, *, edge_dim, num_etypes, in_dim, num_hidden, num_classes,
                num_layers, heads):
    keys = iter(jax.random.split(key, 256))

    def nrm(shape, scale):
        return (scale * jax.random.normal(next(keys), shape)).astype(jnp.float32)

    params = {
        "fc_w": nrm((in_dim, num_hidden),
                    1.414 / math.sqrt(in_dim)).astype(jnp.bfloat16),
        "fc_b": jnp.zeros((1, num_hidden), jnp.float32),
        "layers": [],
    }

    in_feats = ([num_hidden]
                + [num_hidden * heads[l - 1] for l in range(1, num_layers)]
                + [num_hidden * heads[-2]])
    out_feats = [num_hidden] * num_layers + [num_classes]
    residual_flags = [False] + [True] * num_layers   # layer 0: residual=False

    for li in range(num_layers + 1):
        Fi, Do, H = in_feats[li], out_feats[li], heads[li]
        HD = H * Do
        W_all = nrm((Fi, HD), 1.414 / math.sqrt(Fi))   # fc.weight^T, head-major cols
        attn_l = nrm((H, Do), 0.5)
        attn_r = nrm((H, Do), 0.5)
        W_heads = W_all.reshape(Fi, H, Do)
        # fold the attn_l / attn_r reductions into extra matmul columns
        W_el = jnp.einsum("fhd,hd->fh", W_heads, attn_l)     # (Fi, H)
        W_er = jnp.einsum("fhd,hd->fh", W_heads, attn_r)     # (Fi, H)
        fuse_res = bool(residual_flags[li] and Fi != HD)
        cols = [W_all, W_el, W_er]
        if fuse_res:
            cols.append(nrm((Fi, HD), 1.0 / math.sqrt(Fi)))  # res_fc.weight^T
        W_fused = jnp.concatenate(cols, axis=1).astype(jnp.bfloat16)

        # per (head, edge-type) scalar attention term -> (H, num_etypes)
        attn_e = nrm((H, edge_dim), 0.5)
        edge_emb = nrm((num_etypes, edge_dim), 1.0)
        w_e = nrm((edge_dim, H * edge_dim), 1.414 / math.sqrt(edge_dim))
        proj = (edge_emb @ w_e).reshape(num_etypes, H, edge_dim)
        ee_type = jnp.transpose(jnp.sum(proj * attn_e[None], axis=-1), (1, 0))

        params["layers"].append({
            "heads": H, "out_dim": Do,
            "residual": bool(residual_flags[li]),
            "fuse_res": fuse_res,
            "W_fused": W_fused,
            "ee_type": ee_type.astype(jnp.float32),
        })
    return params


# ---------------------------------------------------------------------------
# myGAT forward
# ---------------------------------------------------------------------------

def mygat_forward(params, x, graph, *, num_layers, alpha, negative_slope,
                  tm, vmem_limit):
    Np = graph.shape[0]

    # x = self.fc(x)
    x = linear_bias(x, params["fc_w"], params["fc_b"], tm=tm,
                    vmem_limit=vmem_limit)

    res_attn = None
    logits = None
    for li in range(num_layers + 1):
        conv = params["layers"][li]
        H, D = conv["heads"], conv["out_dim"]
        HD = H * D
        is_final = li == num_layers

        # fused lane-dense projection: feat (H,Np,D) bf16, el/er columns,
        # and (optionally) the residual projection -- x read once per layer.
        feat, ler, res_fused = fused_projection(
            x, conv["W_fused"], H=H, D=D, fuse_res=conv["fuse_res"],
            tm=tm, vmem_limit=vmem_limit)
        el_t = jnp.transpose(ler[:, :H])          # (H, Np) - tiny tensor
        er = ler[:, H:2 * H]                      # (Np, H)

        if conv["residual"]:
            if conv["fuse_res"]:
                resval = res_fused
            else:
                assert x.shape[1] == HD, "identity residual needs Fin == H*D"
                resval = x
        else:
            resval = None

        # res_attn=None for layer 0 and the final layer (reference semantics)
        ra = res_attn if (res_attn is not None and not is_final) else None

        out, a = gat_conv_layer(
            feat, el_t, er, conv["ee_type"], graph,
            res_attn=ra, resval=resval,
            alpha=alpha, negative_slope=negative_slope,
            apply_elu=not is_final, return_attn=not is_final,
            tm=tm, vmem_limit=vmem_limit)

        if not is_final:
            x = out                  # residual-added, ELU'd, flattened (Np, H*D)
            res_attn = a             # bf16 (H, Np, Np)
        else:
            logits = out.reshape(Np, H, D).mean(axis=1)   # logits.mean(1)
    return logits


# ---------------------------------------------------------------------------
# Example run
# ---------------------------------------------------------------------------

if __name__ == "__main__":
    # small, deterministic configuration
    N = 32                 # number of graph nodes
    in_dim = 64
    num_hidden = 32
    num_classes = 8
    num_layers = 2
    heads = [4, 4, 1]      # len == num_layers + 1
    edge_dim = 16
    num_etypes = 3
    alpha = 0.05
    negative_slope = 0.2

    key = jax.random.PRNGKey(0)
    k_feat, k_adj, k_etype, k_param = jax.random.split(key, 4)

    # synthetic graph: random adjacency + self loops, random edge types
    x = jax.random.normal(k_feat, (N, in_dim), dtype=jnp.float32)
    adj = jax.random.bernoulli(k_adj, 0.3, (N, N))
    mask = jnp.logical_or(adj, jnp.eye(N, dtype=bool))
    etype_mat = jax.random.randint(k_etype, (N, N), 0, num_etypes)

    params = init_params(
        k_param,
        edge_dim=edge_dim, num_etypes=num_etypes, in_dim=in_dim,
        num_hidden=num_hidden, num_classes=num_classes,
        num_layers=num_layers, heads=heads,
    )

    # VMEM-aware, generation-aware tile planning
    vmem_limit, budget = _vmem_budget()
    out_feats = [num_hidden] * num_layers + [num_classes]
    layer_cfgs = []
    for li in range(num_layers + 1):
        layer_cfgs.append((heads[li], out_feats[li],
                           0 < li < num_layers,     # consumes res_attn
                           li < num_layers,         # returns attention
                           li > 0))                 # residual
    tm, Np = plan_tiles(N, layer_cfgs, num_etypes, budget)

    # pack adjacency + edge type into one int8 tensor (etype, -1 = no edge),
    # pad nodes to a multiple of the row tile (padded rows/cols carry -1)
    graph = jnp.where(mask, etype_mat.astype(jnp.int8), jnp.int8(-1))
    if Np > N:
        graph = jnp.pad(graph, ((0, Np - N), (0, Np - N)), constant_values=-1)
        xp = jnp.pad(x, ((0, Np - N), (0, 0)))
    else:
        xp = x

    logits = mygat_forward(
        params, xp, graph,
        num_layers=num_layers, alpha=alpha, negative_slope=negative_slope,
        tm=tm, vmem_limit=vmem_limit,
    )
    logits = jax.block_until_ready(logits)[:N]

    assert logits.shape == (N, num_classes)
    assert bool(jnp.all(jnp.isfinite(logits)))
    print("KERNEL_OK")
</pallas_src>

<mosaic_0001>
module attributes {stable_mosaic.version = 11 : i64} {
  func.func @_linear_bias_kernel(%arg0: i32, %arg1: memref<32x64xf32, #tpu.memory_space<vmem>>, %arg2: memref<64x32xbf16, #tpu.memory_space<vmem>>, %arg3: memref<1x32xf32, #tpu.memory_space<vmem>>, %arg4: memref<32x32xf32, #tpu.memory_space<vmem>>) attributes {dimension_semantics = [#tpu.dimension_semantics<parallel>], iteration_bounds = array<i64: 1>, scalar_prefetch = 0 : i64, scratch_operands = 0 : i64, tpu.core_type = #tpu.core_type<tc>, window_params = [{transform_indices = @transform_0, window_bounds = array<i64: 32, 64>}, {pipeline_mode = #tpu.pipeline_mode<synchronous>, transform_indices = @transform_1, window_bounds = array<i64: 64, 32>}, {pipeline_mode = #tpu.pipeline_mode<synchronous>, transform_indices = @transform_2, window_bounds = array<i64: 1, 32>}, {transform_indices = @transform_3, window_bounds = array<i64: 32, 32>}]} {
    %c0 = arith.constant 0 : index
    %c0_0 = arith.constant 0 : index
    %0 = vector.load %arg1[%c0, %c0_0] : memref<32x64xf32, #tpu.memory_space<vmem>>, vector<32x64xf32>
    %1 = arith.truncf %0 : vector<32x64xf32> to vector<32x64xbf16>
    %c0_1 = arith.constant 0 : index
    %c0_2 = arith.constant 0 : index
    %2 = vector.load %arg2[%c0_1, %c0_2] : memref<64x32xbf16, #tpu.memory_space<vmem>>, vector<64x32xbf16>
    %cst = arith.constant dense<0.000000e+00> : vector<32x32xf32>
    %3 = tpu.matmul %1, %2, %cst {dimension_numbers = #tpu.dot_dimension_numbers<[1], [0], [0], [1], [0, 0, 1, 1], [], []>} : vector<32x64xbf16>, vector<64x32xbf16>, vector<32x32xf32> -> vector<32x32xf32>
    %c0_3 = arith.constant 0 : index
    %c0_4 = arith.constant 0 : index
    %4 = vector.load %arg3[%c0_3, %c0_4] : memref<1x32xf32, #tpu.memory_space<vmem>>, vector<1x32xf32>
    %5 = vector.broadcast %4 : vector<1x32xf32> to vector<32x32xf32>
    %6 = arith.addf %3, %5 : vector<32x32xf32>
    %c0_5 = arith.constant 0 : index
    %c0_6 = arith.constant 0 : index
    %7 = vector.load %arg4[%c0_5, %c0_6] : memref<32x32xf32, #tpu.memory_space<vmem>>, vector<32x32xf32>
    tpu.vector_store %arg4[%c0_5, %c0_6], %6 {strides = array<i32>} : memref<32x32xf32, #tpu.memory_space<vmem>>, vector<32x32xf32>,
    return
  }
  func.func @transform_0(%arg0: i32) -> (i32, i32) {
    %c0_i32 = arith.constant 0 : i32
    %c0_i32_0 = arith.constant 0 : i32
    return %arg0, %c0_i32 : i32, i32
  }
  func.func @transform_1(%arg0: i32) -> (i32, i32) {
    %c0_i32 = arith.constant 0 : i32
    %c0_i32_0 = arith.constant 0 : i32
    %c0_i32_1 = arith.constant 0 : i32
    return %c0_i32, %c0_i32_0 : i32, i32
  }
  func.func @transform_2(%arg0: i32) -> (i32, i32) {
    %c0_i32 = arith.constant 0 : i32
    %c0_i32_0 = arith.constant 0 : i32
    %c0_i32_1 = arith.constant 0 : i32
    return %c0_i32, %c0_i32_0 : i32, i32
  }
  func.func @transform_3(%arg0: i32) -> (i32, i32) {
    %c0_i32 = arith.constant 0 : i32
    %c0_i32_0 = arith.constant 0 : i32
    return %arg0, %c0_i32 : i32, i32
  }
}

</mosaic_0001>

<llo_original>
// kernel: tpu_custom_call.1
$region0: #{tpu_custom_call.1}
  #allocation0 [shape = 'u32[]', space=smem, size = 0x4, offset = 0x4, fixed_abs, tag = 'smem constant byte address 0x4 - core index']
  #allocation1 [shape = 'u32[144,128]{1,0:T(1,128)}', space=vmem, size = 0x12000, scoped, tag = 'internal scratch']
  %s0 = inlined_call_operand.vmem [shape: f32[32,64], index: 0, kind: input, shape index: {}]
  %s1 = inlined_call_operand.vmem [shape: bf16[64,32], index: 1, kind: input, shape index: {}]
  %s2 = inlined_call_operand.vmem [shape: f32[1,32], index: 2, kind: input, shape index: {}]
  %s3 = inlined_call_operand.hbm [shape: f32[32,32], index: 3, kind: output, shape index: {}]
  %s4 = sld [smem:[#allocation0]]
  $region22: #{tpu_custom_call.1} parent=0
    _
  %s6 = ssub.s32 1, %s4
  %s7 = scalar_select 0, %s6, %s4
  $region1: #{tpu_custom_call.1} parent=0
    #allocation2 [shape = 'u8[16384]{0}', space=vmem, size = 0x4000, scoped, tag = 'output window, operand 0, single buffered']
    #allocation3 [shape = 's32[1]{0}', space=sflag, size = 0x4, scoped, tag = 'scoped memory for tpu_custom_call.1']
    %8 = vsyncpa [#allocation3], 0
    // Predicated region
    $region2: #{tpu_custom_call.1} parent=1 // pred_check
      _
    $region3: #{tpu_custom_call.1} parent=1 // pred_check_branch
      %10 = sbr.rel (0) target = $region5
    $region4: #{tpu_custom_call.1} parent=1 // pred_region
      _
    $region5: #{tpu_custom_call.1} parent=1 // pred_fallthru
      _
    // Predicated region
    $region6: #{tpu_custom_call.1} parent=1 // pred_check
      _
    $region7: #{tpu_custom_call.1} parent=1 // pred_check_branch
      %12 = sbr.rel (0) target = $region9
    $region8: #{tpu_custom_call.1} parent=1 // pred_region
      _
    $region9: #{tpu_custom_call.1} parent=1 // pred_fallthru
      _
    // Predicated region
    $region10: #{tpu_custom_call.1} parent=1 // pred_check
      _
    $region11: #{tpu_custom_call.1} parent=1 // pred_check_branch
      %14 = sbr.rel (0) target = $region13
    $region12: #{tpu_custom_call.1} parent=1 // pred_region
      _
    $region13: #{tpu_custom_call.1} parent=1 // pred_fallthru
      _
    %v16 = vld [vmem:[%s0] sm:$0xff]
    %v17 = vld [vmem:[%s0 + $0x8] sm:$0xff]
    %v18 = vld [vmem:[%s0 + $0x10] sm:$0xff]
    %v19 = vld [vmem:[%s0 + $0x18] sm:$0xff]
    %v20 = vpack.c.bf16 %v17, %v16
    %v21 = vpack.c.bf16 %v19, %v18
    %v22 = vld [vmem:[%s1] sm:$0xf]
    %v23 = vld [vmem:[%s1 + $0x4] sm:$0xf]
    %v24 = vld [vmem:[%s1 + $0x8] sm:$0xf]
    %v25 = vld [vmem:[%s1 + $0xc] sm:$0xf]
    %v26 = vld [vmem:[%s1 + $0x10] sm:$0xf]
    %v27 = vld [vmem:[%s1 + $0x14] sm:$0xf]
    %v28 = vld [vmem:[%s1 + $0x18] sm:$0xf]
    %v29 = vld [vmem:[%s1 + $0x1c] sm:$0xf]
    %v30 = vld [vmem:[%s2] sm:$0x1]
    %v32 = vlaneseq
    %v33 = vshrl.u32 %v32, 7
    %v34 = vsub.s32 0, %v33
    %v35 = vrot.slane %v30, %v34
    %v45 = vunpack.c.l.b16 %v22
    %v46 = vunpack.c.l.b16 %v23
    %v47 = vunpack.c.l.b16 %v24
    %v48 = vunpack.c.l.b16 %v25
    %v49 = vunpack.c.l.b16 %v26
    %v50 = vunpack.c.l.b16 %v27
    %v51 = vunpack.c.l.b16 %v28
    %v52 = vunpack.c.l.b16 %v29
    %v53 = vpack.c.b16 %v46, %v45
    %v54 = vpack.c.b16 %v48, %v47
    %v55 = vpack.c.b16 %v50, %v49
    %v56 = vpack.c.b16 %v52, %v51
    %vm61 = vcmask 523264
    %v63 = vsel %vm61, %v20, 0
    %v66 = vsel %vm61, %v21, 0
    %68 = vmatprep.subr.bf16.mxu0 0
    %69 = vmatpush1.bf16.msra.mxu0 0
    %70 = vmatprep.subr.bf16.mxu0 0
    %71 = vmatpush1.bf16.msra.mxu0 0
    %72 = vmatprep.subr.bf16.mxu0 0
    %73 = vmatpush1.bf16.msra.mxu0 0
    %74 = vmatprep.subr.bf16.mxu0 0
    %75 = vmatpush1.bf16.msra.mxu0 0
    %76 = vmatprep.subr.bf16.mxu0 0
    %77 = vmatpush1.bf16.msra.mxu0 %v56
    %78 = vmatprep.subr.bf16.mxu0 0
    %79 = vmatpush1.bf16.msra.mxu0 %v55
    %80 = vmatprep.subr.bf16.mxu0 0
    %81 = vmatpush1.bf16.msra.mxu0 %v54
    %82 = vmatprep.subr.bf16.mxu0 0
    %83 = vmatpush1.bf16.msra.mxu0 %v53
    %84 = vmatprep.subr.bf16.mxu0 0
    %85 = vmatpush2.bf16.msra.mxu0 0
    %86 = vmatprep.subr.bf16.mxu0 0
    %87 = vmatpush2.bf16.msra.mxu0 0
    %88 = vmatprep.subr.bf16.mxu0 0
    %89 = vmatpush2.bf16.msra.mxu0 0
    %90 = vmatprep.subr.bf16.mxu0 0
    %91 = vmatpush2.bf16.msra.mxu0 0
    %92 = vmatprep.subr.bf16.mxu0 0
    %93 = vmatpush2.bf16.msra.mxu0 0
    %94 = vmatprep.subr.bf16.mxu0 0
    %95 = vmatpush2.bf16.msra.mxu0 0
    %96 = vmatprep.subr.bf16.mxu0 0
    %97 = vmatpush2.bf16.msra.mxu0 0
    %98 = vmatprep.subr.bf16.mxu0 0
    %99 = vmatpush2.bf16.msra.mxu0 0
    %100 = vmatprep.mubr.bf16.mxu0 0
    %101 = vmatmul.mubr.bf16.gmra.mxu0 %v63
    %v102 = vpop.f32.mrf.mxu0
    %v103 = vadd.f32 %v35, %v102
    %v104 = vpop.f32.mrf.mxu0
    %v105 = vpop.f32.mrf.mxu0
    %v106 = vadd.f32 %v35, %v105
    %v107 = vpop.f32.mrf.mxu0
    %108 = vmatprep.mubr.bf16.mxu0 0
    %109 = vmatmul.mubr.bf16.gmra.mxu0 %v66
    %v110 = vpop.f32.mrf.mxu0
    %v111 = vadd.f32 %v35, %v110
    %v112 = vpop.f32.mrf.mxu0
    %v113 = vpop.f32.mrf.mxu0
    %v114 = vadd.f32 %v35, %v113
    %v115 = vpop.f32.mrf.mxu0
    %116 = vdwg.mxu0
    %vm117 = vcmask 261120
    %118 = vst.msk [vmem:[#allocation2] sm:$0xff] %vm117, %v103
    %119 = vst.msk [vmem:[#allocation2 + $0x8] sm:$0xff] %vm117, %v106
    %120 = vst.msk [vmem:[#allocation2 + $0x10] sm:$0xff] %vm117, %v111
    %121 = vst.msk [vmem:[#allocation2 + $0x18] sm:$0xff] %vm117, %v114
    // Predicated region
    $region14: #{tpu_custom_call.1} parent=1 // pred_check
      _
    $region15: #{tpu_custom_call.1} parent=1 // pred_check_branch
      %123 = sbr.rel (0) target = $region17
    $region16: #{tpu_custom_call.1} parent=1 // pred_region
      %s125 = ssub.s32 512, 512
      %126 = vsyncadd [#allocation3], %s125
      %s127 = sshll.u32 [#allocation2], 4
      %s128 = int_to_ptr.vmem [resolvable:$true] %s127
      %133 = dma.vmem_to_hbm [thread:$0]  %s128, 512, %s3, [#allocation3], 128, 128, 8
    $region17: #{tpu_custom_call.1} parent=1 // pred_fallthru
      _
    // Predicated region
    $region18: #{tpu_custom_call.1} parent=1 // pred_check
      _
    $region19: #{tpu_custom_call.1} parent=1 // pred_check_branch
      %135 = sbr.rel (0) target = $region21
    $region20: #{tpu_custom_call.1} parent=1 // pred_region
      %136 = dma.done [#allocation3], 512
    $region21: #{tpu_custom_call.1} parent=1 // pred_fallthru
      _
    %137 = vsyncpa [#allocation3], 1

</llo_original>
